<compile_context>
chip_gen: v5e
topology: v5e:2x2
jax: 0.10.0
libtpu: 0.0.40
codegen_flags: <defaults>
</compile_context>

<pallas_src>
import functools

import jax
import jax.numpy as jnp
from jax.experimental import pallas as pl
from jax.experimental.pallas import tpu as pltpu


def _elu(x, alpha=1.0):
    # ELU; jnp.minimum keeps the unselected exp branch finite.
    return jnp.where(x > 0, x, alpha * (jnp.exp(jnp.minimum(x, 0.0)) - 1.0))


# ---------------------------------------------------------------------------
# Fused Pallas kernel (one (batch, hemisphere) slice per grid step)
# ---------------------------------------------------------------------------
def _make_resblock_kernel(Cin, Cout, H, W, S, pool, alpha):
    Wp = W // pool
    Hs = H - S + 1
    WC = W * Cout          # lane width of each temporal-branch output
    PC = Wp * Cout         # lane width after the pool

    def kernel(x_ref, band_ref, bt_ref, wsb_ref, bs_ref, o_ref):
        # x_ref:    (Cin, H, W)           native NCDHW slice (no transpose/pad)
        # band_ref: (Cin, W, 2*W*Cout)    fused temporal1(K taps)+temporal2 bands
        # bt_ref:   (1, 2*W*Cout)         tiled biases [b1 | b2]
        # wsb_ref:  (S*Wp*Cout, Wp*Cout)  fused block-diagonal spatial weights
        # bs_ref:   (1, Wp*Cout)          tiled spatial bias
        # o_ref:    (H, Wp*Cout)          lane-dense output block
        mm_dtype = band_ref.dtype

        # --- temporal1 (1,1,K 'same') + temporal2 (1,1,1): ONE banded matmul
        # per input channel, contracting over the native lane dim W.  Output
        # columns are [y1 : W*Cout | y2 : W*Cout], both laid out as w*Cout + o.
        acc = jnp.dot(x_ref[0].astype(mm_dtype), band_ref[0],
                      preferred_element_type=jnp.float32)
        for c in range(1, Cin):
            acc = acc + jnp.dot(x_ref[c].astype(mm_dtype), band_ref[c],
                                preferred_element_type=jnp.float32)
        y = _elu(acc + bt_ref[...], alpha)                  # (H, 2*W*Cout)
        xsum = y[:, :WC] + y[:, WC:]                        # (H, W*Cout) lane-dense

        # --- AvgPool3d((1,1,pool)) along samples: lane-slice adds (floor mode).
        x4 = xsum[:, :Wp * pool * Cout].reshape(H, Wp, pool * Cout)
        pooled = x4[:, :, 0:Cout]
        for q in range(1, pool):
            pooled = pooled + x4[:, :, q * Cout:(q + 1) * Cout]
        pooled = (pooled * (1.0 / pool)).reshape(H, PC)      # (H, Wp*Cout)

        # --- spatial (1,S,1 'valid'): im2col along H on the lane-dense layout,
        # then ONE matmul against the block-diagonal fused weight.
        slab = jnp.concatenate([pooled[s:s + Hs, :] for s in range(S)], axis=-1)
        spa = _elu(jnp.dot(slab.astype(mm_dtype), wsb_ref[...],
                           preferred_element_type=jnp.float32) + bs_ref[...],
                   alpha)                                     # (Hs, Wp*Cout)

        # --- residual add (broadcasts along H when Hs == 1, like torch)
        o_ref[...] = (pooled + spa).astype(o_ref.dtype)

    return kernel


# ---------------------------------------------------------------------------
# Wrapper
# ---------------------------------------------------------------------------
def eegsym_resblock_forward(x, packed, *, kernel_size, spatial_kernel, pool,
                            ELUalpha=1.0):
    """x: (B, Cin, D, H, W) NCDHW (PyTorch). Returns (B, Cout, D, H, W//pool)."""
    del kernel_size  # baked into the packed banded weights
    B, Cin, D, H, W = x.shape
    S = spatial_kernel
    Wp = W // pool
    Hs = H - S + 1
    Cout = packed["bias_s"].shape[-1] // Wp
    WC2 = 2 * W * Cout
    PC = Wp * Cout
    SPC = S * PC
    assert Hs >= 1 and (Hs == 1 or Hs == H)   # torch broadcast rule for residual
    assert packed["band"].shape == (Cin, W, WC2)

    # Advisory cost estimate (counts the structural zeros in the banded weights
    # as flops — conservative) so XLA schedules surrounding ops sensibly.
    flops = 2 * B * D * H * (Cin * W * WC2 + Hs * SPC * PC)
    transcendentals = B * D * H * (WC2 + Hs * PC)
    bytes_accessed = 4 * (x.size + B * D * H * PC
                          + packed["band"].size + packed["wsb"].size)

    out = pl.pallas_call(
        _make_resblock_kernel(Cin, Cout, H, W, S, pool, ELUalpha),
        grid=(B, D),
        in_specs=[
            pl.BlockSpec((None, Cin, None, H, W), lambda b, d: (b, 0, d, 0, 0)),
            pl.BlockSpec((Cin, W, WC2), lambda b, d: (0, 0, 0)),
            pl.BlockSpec((1, WC2), lambda b, d: (0, 0)),
            pl.BlockSpec((SPC, PC), lambda b, d: (0, 0)),
            pl.BlockSpec((1, PC), lambda b, d: (0, 0)),
        ],
        out_specs=pl.BlockSpec((None, None, H, PC), lambda b, d: (b, d, 0, 0)),
        out_shape=jax.ShapeDtypeStruct((B, D, H, PC), jnp.float32),
        compiler_params=pltpu.CompilerParams(
            dimension_semantics=("parallel", "parallel"),
            vmem_limit_bytes=32 * 1024 * 1024),
        cost_estimate=pl.CostEstimate(flops=int(flops),
                                      transcendentals=int(transcendentals),
                                      bytes_accessed=int(bytes_accessed)),
    )(x, packed["band"], packed["bias_t"], packed["wsb"], packed["bias_s"])

    # Only remaining host glue: tiny reshape+transpose back to PyTorch NCDHW.
    return jnp.transpose(out.reshape(B, D, H, Wp, Cout), (0, 4, 1, 2, 3))


# ---------------------------------------------------------------------------
# Parameters: deterministic synthetic init + eval-mode BatchNorm folding
# ---------------------------------------------------------------------------
def make_eegsym_resblock_params(key, in_channels, out_channels, kernel_size,
                                spatial_kernel, eps=1e-5):
    Cin, Cout, K, S = in_channels, out_channels, kernel_size, spatial_kernel
    keys = jax.random.split(key, 6)

    def conv_init(k, shape, fan_in):
        kw, kb = jax.random.split(k)
        s = 1.0 / float(fan_in) ** 0.5
        w = jax.random.uniform(kw, shape, jnp.float32, -s, s)
        b = jax.random.uniform(kb, shape[:1], jnp.float32, -s, s)
        return w, b

    def bn_init(k):
        kg, kb, km, kv = jax.random.split(k, 4)
        gamma = 1.0 + 0.1 * jax.random.normal(kg, (Cout,), jnp.float32)
        beta = 0.1 * jax.random.normal(kb, (Cout,), jnp.float32)
        mean = 0.1 * jax.random.normal(km, (Cout,), jnp.float32)
        var = (1.0 + 0.1 * jax.random.normal(kv, (Cout,), jnp.float32)) ** 2
        return gamma, beta, mean, var

    def fold(w, b, bn):   # inference-mode BN folded into the preceding conv
        gamma, beta, mean, var = bn
        scale = gamma / jnp.sqrt(var + eps)
        return (w * scale.reshape((-1,) + (1,) * (w.ndim - 1)),
                (b - mean) * scale + beta)

    w1, b1 = conv_init(keys[0], (Cout, Cin, K), Cin * K)       # temporal1
    w1, b1 = fold(w1, b1, bn_init(keys[1]))
    w2, b2 = conv_init(keys[2], (Cout, Cin), Cin)              # temporal2
    w2, b2 = fold(w2, b2, bn_init(keys[3]))
    ws, bs = conv_init(keys[4], (Cout, Cout, S), Cout * S)     # spatial
    ws, bs = fold(ws, bs, bn_init(keys[5]))
    return {"w1": w1, "b1": b1, "w2": w2, "b2": b2, "ws": ws, "bs": bs}


def pack_eegsym_resblock_params(raw, *, samples, pool, dtype=jnp.float32):
    """Pack folded weights into the fused kernel operands.

    dtype=jnp.bfloat16 halves the matmul operand bytes on v6e/v7x (elementwise
    math stays f32 inside the kernel); keep f32 when validating at 1e-3.
    """
    w1, b1 = raw["w1"], raw["b1"]       # (Cout, Cin, K), (Cout,)
    w2, b2 = raw["w2"], raw["b2"]       # (Cout, Cin),    (Cout,)
    ws, bs = raw["ws"], raw["bs"]       # (Cout, Cout, S),(Cout,)
    Cout, Cin, K = w1.shape
    S = ws.shape[-1]
    W = samples
    Wp = W // pool
    pL = (K - 1) // 2                   # torch 'same': left=(K-1)//2, right=K//2

    # Temporal band: fuse K taps of temporal1 + the 1x1x1 temporal2 into one
    # (W, 2*W*Cout) operand per input channel; contraction over the native W.
    w_in = jnp.arange(W)[:, None]
    w_out = jnp.arange(W)[None, :]
    k_idx = w_in - w_out + pL                                  # (W, W)
    valid = (k_idx >= 0) & (k_idx < K)                         # encodes zero pad
    k_safe = jnp.clip(k_idx, 0, K - 1)
    w1_t = jnp.transpose(w1, (1, 2, 0))                        # (Cin, K, Cout)
    band1 = w1_t[:, k_safe, :] * valid[None, :, :, None]       # (Cin, W, W, Cout)
    band2 = (jnp.eye(W)[None, :, :, None] *
             jnp.transpose(w2, (1, 0))[:, None, None, :])      # (Cin, W, W, Cout)
    band = jnp.concatenate([band1.reshape(Cin, W, W * Cout),
                            band2.reshape(Cin, W, W * Cout)], axis=-1)
    bias_t = jnp.concatenate([jnp.tile(b1, W), jnp.tile(b2, W)]) \
                .reshape(1, 2 * W * Cout)

    # Spatial: fuse the S taps into one block-diagonal (S*Wp*Cout, Wp*Cout).
    ws_t = jnp.transpose(ws, (2, 1, 0))                        # (S, Cin, Cout)
    wsb = jnp.concatenate([jnp.kron(jnp.eye(Wp), ws_t[s]) for s in range(S)],
                          axis=0)
    bias_s = jnp.tile(bs, Wp).reshape(1, Wp * Cout)

    return {"band": band.astype(dtype), "bias_t": bias_t.astype(jnp.float32),
            "wsb": wsb.astype(dtype), "bias_s": bias_s.astype(jnp.float32)}


# ---------------------------------------------------------------------------
# Pure-JAX reference (same folded weights) for the correctness check
# ---------------------------------------------------------------------------
def eegsym_resblock_reference(x, raw, *, kernel_size, spatial_kernel, pool,
                              ELUalpha=1.0):
    B, Cin, D, H, W = x.shape
    K, S = kernel_size, spatial_kernel
    w1, b1 = raw["w1"], raw["b1"]
    w2, b2 = raw["w2"], raw["b2"]
    ws, bs = raw["ws"], raw["bs"]
    Cout = w1.shape[0]
    pL = (K - 1) // 2
    pR = K - 1 - pL

    xpad = jnp.pad(x, ((0, 0), (0, 0), (0, 0), (0, 0), (pL, pR)))
    y1 = jnp.zeros((B, Cout, D, H, W), jnp.float32)
    for k in range(K):
        y1 = y1 + jnp.einsum("bcdhw,oc->bodhw", xpad[..., k:k + W], w1[:, :, k])
    y1 = _elu(y1 + b1[None, :, None, None, None], ELUalpha)
    y2 = _elu(jnp.einsum("bcdhw,oc->bodhw", x, w2)
              + b2[None, :, None, None, None], ELUalpha)
    xs = y1 + y2

    Wp = W // pool
    xp = xs[..., :Wp * pool].reshape(B, Cout, D, H, Wp, pool).mean(-1)

    Hs = H - S + 1
    spa = jnp.zeros((B, Cout, D, Hs, Wp), jnp.float32)
    for s in range(S):
        spa = spa + jnp.einsum("bcdhw,oc->bodhw",
                               xp[:, :, :, s:s + Hs, :], ws[:, :, s])
    spa = _elu(spa + bs[None, :, None, None, None], ELUalpha)
    return xp + spa


# ---------------------------------------------------------------------------
if __name__ == "__main__":
    # EEGSymResBlock(in_channels=4, out_channels=8, kernel_size=3,
    #                spatial_kernel=5, pool=2) on x: (B, Cin, D, H, W)
    B, Cin, Cout = 2, 4, 8
    D, H, W = 2, 5, 16            # hemispheres, electrodes/hemisphere, samples
    K, S, pool = 3, 5, 2          # spatial_kernel == H (EEGSym usage)

    key = jax.random.PRNGKey(0)
    kx, kp = jax.random.split(key)
    x = jax.random.normal(kx, (B, Cin, D, H, W), jnp.float32)
    raw = make_eegsym_resblock_params(kp, Cin, Cout, K, S)
    packed = pack_eegsym_resblock_params(raw, samples=W, pool=pool)

    fwd = jax.jit(functools.partial(eegsym_resblock_forward,
                                    kernel_size=K, spatial_kernel=S, pool=pool))
    out = jax.block_until_ready(fwd(x, packed))

    assert out.shape == (B, Cout, D, H, W // pool), out.shape
    assert bool(jnp.all(jnp.isfinite(out)))

    ref = eegsym_resblock_reference(x, raw, kernel_size=K,
                                    spatial_kernel=S, pool=pool)
    assert bool(jnp.allclose(out, ref, atol=1e-3, rtol=1e-3)), \
        float(jnp.max(jnp.abs(out - ref)))

    print("KERNEL_OK")
</pallas_src>

<mosaic_0001>
module attributes {stable_mosaic.version = 11 : i64} {
  func.func @kernel(%arg0: i32, %arg1: i32, %arg2: memref<1x4x1x5x16xf32, #tpu.memory_space<vmem>>, %arg3: memref<4x16x256xf32, #tpu.memory_space<vmem>>, %arg4: memref<1x256xf32, #tpu.memory_space<vmem>>, %arg5: memref<320x64xf32, #tpu.memory_space<vmem>>, %arg6: memref<1x64xf32, #tpu.memory_space<vmem>>, %arg7: memref<1x1x5x64xf32, #tpu.memory_space<vmem>>) attributes {dimension_semantics = [#tpu.dimension_semantics<parallel>, #tpu.dimension_semantics<parallel>], iteration_bounds = array<i64: 2, 2>, scalar_prefetch = 0 : i64, scratch_operands = 0 : i64, tpu.core_type = #tpu.core_type<tc>, window_params = [{transform_indices = @transform_0, window_bounds = array<i64: 1, 4, 1, 5, 16>}, {pipeline_mode = #tpu.pipeline_mode<synchronous>, transform_indices = @transform_1, window_bounds = array<i64: 4, 16, 256>}, {pipeline_mode = #tpu.pipeline_mode<synchronous>, transform_indices = @transform_2, window_bounds = array<i64: 1, 256>}, {pipeline_mode = #tpu.pipeline_mode<synchronous>, transform_indices = @transform_3, window_bounds = array<i64: 320, 64>}, {pipeline_mode = #tpu.pipeline_mode<synchronous>, transform_indices = @transform_4, window_bounds = array<i64: 1, 64>}, {transform_indices = @transform_5, window_bounds = array<i64: 1, 1, 5, 64>}]} {
    %c0 = arith.constant 0 : index
    %c0_0 = arith.constant 0 : index
    %c0_1 = arith.constant 0 : index
    %c0_2 = arith.constant 0 : index
    %c0_3 = arith.constant 0 : index
    %0 = vector.load %arg2[%c0, %c0_0, %c0_1, %c0_2, %c0_3] : memref<1x4x1x5x16xf32, #tpu.memory_space<vmem>>, vector<1x1x1x5x16xf32>
    %1 = vector.shape_cast %0 : vector<1x1x1x5x16xf32> to vector<5x16xf32>
    %c0_4 = arith.constant 0 : index
    %c0_5 = arith.constant 0 : index
    %c0_6 = arith.constant 0 : index
    %2 = vector.load %arg3[%c0_4, %c0_5, %c0_6] : memref<4x16x256xf32, #tpu.memory_space<vmem>>, vector<1x16x256xf32>
    %3 = vector.shape_cast %2 : vector<1x16x256xf32> to vector<16x256xf32>
    %cst = arith.constant dense<0.000000e+00> : vector<5x256xf32>
    %4 = tpu.matmul %1, %3, %cst {dimension_numbers = #tpu.dot_dimension_numbers<[1], [0], [0], [1], [0, 0, 1, 1], [], []>} : vector<5x16xf32>, vector<16x256xf32>, vector<5x256xf32> -> vector<5x256xf32>
    %c0_7 = arith.constant 0 : index
    %c1 = arith.constant 1 : index
    %c0_8 = arith.constant 0 : index
    %c0_9 = arith.constant 0 : index
    %c0_10 = arith.constant 0 : index
    %5 = vector.load %arg2[%c0_7, %c1, %c0_8, %c0_9, %c0_10] : memref<1x4x1x5x16xf32, #tpu.memory_space<vmem>>, vector<1x1x1x5x16xf32>
    %6 = vector.shape_cast %5 : vector<1x1x1x5x16xf32> to vector<5x16xf32>
    %c1_11 = arith.constant 1 : index
    %c0_12 = arith.constant 0 : index
    %c0_13 = arith.constant 0 : index
    %7 = vector.load %arg3[%c1_11, %c0_12, %c0_13] : memref<4x16x256xf32, #tpu.memory_space<vmem>>, vector<1x16x256xf32>
    %8 = vector.shape_cast %7 : vector<1x16x256xf32> to vector<16x256xf32>
    %cst_14 = arith.constant dense<0.000000e+00> : vector<5x256xf32>
    %9 = tpu.matmul %6, %8, %cst_14 {dimension_numbers = #tpu.dot_dimension_numbers<[1], [0], [0], [1], [0, 0, 1, 1], [], []>} : vector<5x16xf32>, vector<16x256xf32>, vector<5x256xf32> -> vector<5x256xf32>
    %10 = arith.addf %4, %9 : vector<5x256xf32>
    %c0_15 = arith.constant 0 : index
    %c2 = arith.constant 2 : index
    %c0_16 = arith.constant 0 : index
    %c0_17 = arith.constant 0 : index
    %c0_18 = arith.constant 0 : index
    %11 = vector.load %arg2[%c0_15, %c2, %c0_16, %c0_17, %c0_18] : memref<1x4x1x5x16xf32, #tpu.memory_space<vmem>>, vector<1x1x1x5x16xf32>
    %12 = vector.shape_cast %11 : vector<1x1x1x5x16xf32> to vector<5x16xf32>
    %c2_19 = arith.constant 2 : index
    %c0_20 = arith.constant 0 : index
    %c0_21 = arith.constant 0 : index
    %13 = vector.load %arg3[%c2_19, %c0_20, %c0_21] : memref<4x16x256xf32, #tpu.memory_space<vmem>>, vector<1x16x256xf32>
    %14 = vector.shape_cast %13 : vector<1x16x256xf32> to vector<16x256xf32>
    %cst_22 = arith.constant dense<0.000000e+00> : vector<5x256xf32>
    %15 = tpu.matmul %12, %14, %cst_22 {dimension_numbers = #tpu.dot_dimension_numbers<[1], [0], [0], [1], [0, 0, 1, 1], [], []>} : vector<5x16xf32>, vector<16x256xf32>, vector<5x256xf32> -> vector<5x256xf32>
    %16 = arith.addf %10, %15 : vector<5x256xf32>
    %c0_23 = arith.constant 0 : index
    %c3 = arith.constant 3 : index
    %c0_24 = arith.constant 0 : index
    %c0_25 = arith.constant 0 : index
    %c0_26 = arith.constant 0 : index
    %17 = vector.load %arg2[%c0_23, %c3, %c0_24, %c0_25, %c0_26] : memref<1x4x1x5x16xf32, #tpu.memory_space<vmem>>, vector<1x1x1x5x16xf32>
    %18 = vector.shape_cast %17 : vector<1x1x1x5x16xf32> to vector<5x16xf32>
    %c3_27 = arith.constant 3 : index
    %c0_28 = arith.constant 0 : index
    %c0_29 = arith.constant 0 : index
    %19 = vector.load %arg3[%c3_27, %c0_28, %c0_29] : memref<4x16x256xf32, #tpu.memory_space<vmem>>, vector<1x16x256xf32>
    %20 = vector.shape_cast %19 : vector<1x16x256xf32> to vector<16x256xf32>
    %cst_30 = arith.constant dense<0.000000e+00> : vector<5x256xf32>
    %21 = tpu.matmul %18, %20, %cst_30 {dimension_numbers = #tpu.dot_dimension_numbers<[1], [0], [0], [1], [0, 0, 1, 1], [], []>} : vector<5x16xf32>, vector<16x256xf32>, vector<5x256xf32> -> vector<5x256xf32>
    %22 = arith.addf %16, %21 : vector<5x256xf32>
    %c0_31 = arith.constant 0 : index
    %c0_32 = arith.constant 0 : index
    %23 = vector.load %arg4[%c0_31, %c0_32] : memref<1x256xf32, #tpu.memory_space<vmem>>, vector<1x256xf32>
    %24 = vector.broadcast %23 : vector<1x256xf32> to vector<5x256xf32>
    %25 = arith.addf %22, %24 : vector<5x256xf32>
    %cst_33 = arith.constant 0.000000e+00 : f32
    %26 = vector.broadcast %cst_33 : f32 to vector<5x256xf32>
    %27 = arith.cmpf ogt, %25, %26 : vector<5x256xf32>
    %cst_34 = arith.constant 0.000000e+00 : f32
    %28 = vector.broadcast %cst_34 : f32 to vector<5x256xf32>
    %29 = arith.minimumf %25, %28 : vector<5x256xf32>
    %30 = math.exp %29 : vector<5x256xf32>
    %cst_35 = arith.constant 1.000000e+00 : f32
    %31 = vector.broadcast %cst_35 : f32 to vector<5x256xf32>
    %32 = arith.subf %30, %31 : vector<5x256xf32>
    %cst_36 = arith.constant 1.000000e+00 : f32
    %33 = vector.broadcast %cst_36 : f32 to vector<5x256xf32>
    %34 = arith.mulf %33, %32 : vector<5x256xf32>
    %35 = arith.select %27, %25, %34 : vector<5x256xi1>, vector<5x256xf32>
    %36 = vector.extract_strided_slice %35 {offsets = [0, 0], sizes = [5, 128], strides = [1, 1]} : vector<5x256xf32> to vector<5x128xf32>
    %37 = vector.extract_strided_slice %35 {offsets = [0, 128], sizes = [5, 128], strides = [1, 1]} : vector<5x256xf32> to vector<5x128xf32>
    %38 = arith.addf %36, %37 : vector<5x128xf32>
    %39 = vector.shape_cast %38 : vector<5x128xf32> to vector<5x8x16xf32>
    %40 = vector.extract_strided_slice %39 {offsets = [0, 0, 0], sizes = [5, 8, 8], strides = [1, 1, 1]} : vector<5x8x16xf32> to vector<5x8x8xf32>
    %41 = vector.extract_strided_slice %39 {offsets = [0, 0, 8], sizes = [5, 8, 8], strides = [1, 1, 1]} : vector<5x8x16xf32> to vector<5x8x8xf32>
    %42 = arith.addf %40, %41 : vector<5x8x8xf32>
    %cst_37 = arith.constant 5.000000e-01 : f32
    %43 = vector.broadcast %cst_37 : f32 to vector<5x8x8xf32>
    %44 = arith.mulf %42, %43 : vector<5x8x8xf32>
    %45 = vector.shape_cast %44 : vector<5x8x8xf32> to vector<5x64xf32>
    %46 = vector.extract_strided_slice %45 {offsets = [0, 0], sizes = [1, 64], strides = [1, 1]} : vector<5x64xf32> to vector<1x64xf32>
    %47 = vector.extract_strided_slice %45 {offsets = [1, 0], sizes = [1, 64], strides = [1, 1]} : vector<5x64xf32> to vector<1x64xf32>
    %48 = vector.extract_strided_slice %45 {offsets = [2, 0], sizes = [1, 64], strides = [1, 1]} : vector<5x64xf32> to vector<1x64xf32>
    %49 = vector.extract_strided_slice %45 {offsets = [3, 0], sizes = [1, 64], strides = [1, 1]} : vector<5x64xf32> to vector<1x64xf32>
    %50 = vector.extract_strided_slice %45 {offsets = [4, 0], sizes = [1, 64], strides = [1, 1]} : vector<5x64xf32> to vector<1x64xf32>
    %51 = tpu.concatenate %46, %47, %48, %49, %50 in 1 : vector<1x64xf32>, vector<1x64xf32>, vector<1x64xf32>, vector<1x64xf32>, vector<1x64xf32> -> vector<1x320xf32>
    %c0_38 = arith.constant 0 : index
    %c0_39 = arith.constant 0 : index
    %52 = vector.load %arg5[%c0_38, %c0_39] : memref<320x64xf32, #tpu.memory_space<vmem>>, vector<320x64xf32>
    %cst_40 = arith.constant dense<0.000000e+00> : vector<1x64xf32>
    %53 = tpu.matmul %51, %52, %cst_40 {dimension_numbers = #tpu.dot_dimension_numbers<[1], [0], [0], [1], [0, 0, 1, 1], [], []>} : vector<1x320xf32>, vector<320x64xf32>, vector<1x64xf32> -> vector<1x64xf32>
    %c0_41 = arith.constant 0 : index
    %c0_42 = arith.constant 0 : index
    %54 = vector.load %arg6[%c0_41, %c0_42] : memref<1x64xf32, #tpu.memory_space<vmem>>, vector<1x64xf32>
    %55 = arith.addf %53, %54 : vector<1x64xf32>
    %cst_43 = arith.constant 0.000000e+00 : f32
    %56 = vector.broadcast %cst_43 : f32 to vector<1x64xf32>
    %57 = arith.cmpf ogt, %55, %56 : vector<1x64xf32>
    %cst_44 = arith.constant 0.000000e+00 : f32
    %58 = vector.broadcast %cst_44 : f32 to vector<1x64xf32>
    %59 = arith.minimumf %55, %58 : vector<1x64xf32>
    %60 = math.exp %59 : vector<1x64xf32>
    %cst_45 = arith.constant 1.000000e+00 : f32
    %61 = vector.broadcast %cst_45 : f32 to vector<1x64xf32>
    %62 = arith.subf %60, %61 : vector<1x64xf32>
    %cst_46 = arith.constant 1.000000e+00 : f32
    %63 = vector.broadcast %cst_46 : f32 to vector<1x64xf32>
    %64 = arith.mulf %63, %62 : vector<1x64xf32>
    %65 = arith.select %57, %55, %64 : vector<1x64xi1>, vector<1x64xf32>
    %66 = vector.broadcast %65 : vector<1x64xf32> to vector<5x64xf32>
    %67 = arith.addf %45, %66 : vector<5x64xf32>
    %c0_47 = arith.constant 0 : index
    %c0_48 = arith.constant 0 : index
    %c0_49 = arith.constant 0 : index
    %c0_50 = arith.constant 0 : index
    %68 = vector.load %arg7[%c0_47, %c0_48, %c0_49, %c0_50] : memref<1x1x5x64xf32, #tpu.memory_space<vmem>>, vector<1x1x5x64xf32>
    %69 = vector.shape_cast %68 : vector<1x1x5x64xf32> to vector<5x64xf32>
    %70 = vector.shape_cast %67 : vector<5x64xf32> to vector<1x1x5x64xf32>
    tpu.vector_store %arg7[%c0_47, %c0_48, %c0_49, %c0_50], %70 {strides = array<i32>} : memref<1x1x5x64xf32, #tpu.memory_space<vmem>>, vector<1x1x5x64xf32>,
    return
  }
  func.func @transform_0(%arg0: i32, %arg1: i32) -> (i32, i32, i32, i32, i32) {
    %c0_i32 = arith.constant 0 : i32
    %c0_i32_0 = arith.constant 0 : i32
    %c0_i32_1 = arith.constant 0 : i32
    %c0_i32_2 = arith.constant 0 : i32
    return %arg0, %c0_i32, %arg1, %c0_i32_0, %c0_i32_1 : i32, i32, i32, i32, i32
  }
  func.func @transform_1(%arg0: i32, %arg1: i32) -> (i32, i32, i32) {
    %c0_i32 = arith.constant 0 : i32
    %c0_i32_0 = arith.constant 0 : i32
    %c0_i32_1 = arith.constant 0 : i32
    %c0_i32_2 = arith.constant 0 : i32
    return %c0_i32, %c0_i32_0, %c0_i32_1 : i32, i32, i32
  }
  func.func @transform_2(%arg0: i32, %arg1: i32) -> (i32, i32) {
    %c0_i32 = arith.constant 0 : i32
    %c0_i32_0 = arith.constant 0 : i32
    %c0_i32_1 = arith.constant 0 : i32
    return %c0_i32, %c0_i32_0 : i32, i32
  }
  func.func @transform_3(%arg0: i32, %arg1: i32) -> (i32, i32) {
    %c0_i32 = arith.constant 0 : i32
    %c0_i32_0 = arith.constant 0 : i32
    %c0_i32_1 = arith.constant 0 : i32
    return %c0_i32, %c0_i32_0 : i32, i32
  }
  func.func @transform_4(%arg0: i32, %arg1: i32) -> (i32, i32) {
    %c0_i32 = arith.constant 0 : i32
    %c0_i32_0 = arith.constant 0 : i32
    %c0_i32_1 = arith.constant 0 : i32
    return %c0_i32, %c0_i32_0 : i32, i32
  }
  func.func @transform_5(%arg0: i32, %arg1: i32) -> (i32, i32, i32, i32) {
    %c0_i32 = arith.constant 0 : i32
    %c0_i32_0 = arith.constant 0 : i32
    %c0_i32_1 = arith.constant 0 : i32
    return %arg0, %arg1, %c0_i32, %c0_i32_0 : i32, i32, i32, i32
  }
}

</mosaic_0001>

<llo_original>
// kernel: eegsym_resblock_forward.1
$region0: #{eegsym_resblock_forward.1}
  #allocation0 [shape = 'u32[]', space=smem, size = 0x4, offset = 0x4, fixed_abs, tag = 'smem constant byte address 0x4 - core index']
  #allocation1 [shape = 'u32[72,128]{1,0:T(1,128)}', space=vmem, size = 0x9000, scoped, tag = 'internal scratch']
  %s0 = inlined_call_operand.vmem [shape: f32[2,4,2,5,16], index: 0, kind: input, shape index: {}]
  %s1 = inlined_call_operand.vmem [shape: f32[4,16,256], index: 1, kind: input, shape index: {}]
  %s2 = inlined_call_operand.vmem [shape: f32[1,256], index: 2, kind: input, shape index: {}]
  %s3 = inlined_call_operand.vmem [shape: f32[320,64], index: 3, kind: input, shape index: {}]
  %s4 = inlined_call_operand.vmem [shape: f32[1,64], index: 4, kind: input, shape index: {}]
  %s5 = inlined_call_operand.vmem [shape: f32[2,2,5,64], index: 5, kind: output, shape index: {}]
  %s6 = sld [smem:[#allocation0]]
  $region91: #{eegsym_resblock_forward.1} parent=0
    _
  %s8 = ssub.s32 1, %s6
  %s9 = scalar_select 0, %s8, %s6
  $region1: #{eegsym_resblock_forward.1} parent=0
    #allocation2 [shape = 'u8[32768]{0}', space=vmem, size = 0x8000, scoped, tag = 'input window, operand 0']
    loop: start=0, step=1, limit=6
    $region2: #{eegsym_resblock_forward.1} parent=1 // loop_pre_header
      _
    $region3: #{eegsym_resblock_forward.1} parent=1 // loop_header
      %s11 = sphi 0, %s15
      %p12 = scmp.ge.s32.totalorder %s11, 6
      %s18 = sphi 0, %s30
      %s19 = sphi 0, %s26
      %s20 = sphi 0, %s18
      %s21 = sphi 0, %s19
      %s22 = sphi 0, %s20
      %s23 = sphi 0, %s21
      %s35 = sphi 0, %s37
      %s38 = sphi 0, %s35
      %s39 = sphi 0, %s38
      %s55 = sphi 0, %s39
      %s59 = sphi 0, %s59
      %s61 = sphi 0, %s59
      %s62 = sphi 0, %s61
      %s76 = sphi 0, %s62
      %s80 = sphi 0, %s80
      %s82 = sphi 0, %s80
      %s83 = sphi 0, %s82
      %s97 = sphi 0, %s83
      %s101 = sphi 0, %s101
      %s103 = sphi 0, %s101
      %s104 = sphi 0, %s103
      %s118 = sphi 0, %s104
      %s122 = sphi 0, %s122
      %s124 = sphi 0, %s122
      %s125 = sphi 0, %s124
      %s139 = sphi 0, %s125
      %s147 = sphi 0, %s149
      %s150 = sphi 0, %s147
      %s151 = sphi 0, %s150
      %s167 = sphi 0, %s151
    $region4: #{eegsym_resblock_forward.1} parent=1 // loop_header_branch
      %14 = sbr.rel (%p12) target = $region8
    $region5: #{eegsym_resblock_forward.1} parent=1 // loop_body
      %s16 = ssub.s32 %s11, 1
      %s17 = ssub.s32 %s11, 2
      %s24 = sadd.s32 1, %s19
      %p25 = scmp.ge.s32.totalorder %s24, 2
      %s26 = scalar_select %p25, 0, %s24
      %s27 = sadd.s32 1, %s18
      %s28 = scalar_select %p25, %s27, %s18
      %p29 = scmp.ge.s32.totalorder %s28, 2
      %s30 = scalar_select %p29, 0, %s28
      %s31 = ssub.s32 %s18, %s30
      %s32 = ssub.s32 %s19, %s26
      %s33 = sor.u32 %s31, %s32
      %p34 = scmp.eq.s32.totalorder %s33, 0
      %s36 = sadd.s32 %s35, 1
      %s37 = scalar_select %p34, %s35, %s36
      %p40 = pneg %p34
      %p41 = scmp.eq.s32.totalorder %s11, 3
      %p42 = por %p40, %p41
      %p43 = scmp.ne.s32.totalorder %s35, %s38
      %p44 = scmp.eq.s32.totalorder %s11, 0
      %p45 = por %p43, %p44
      %p46 = scmp.ne.s32.totalorder %s35, %s38
      %p47 = scmp.eq.s32.totalorder %s16, 3
      %p48 = por %p46, %p47
      %p49 = scmp.ne.s32.totalorder %s38, %s39
      %p50 = scmp.eq.s32.totalorder %s16, 0
      %p51 = por %p49, %p50
      %p52 = scmp.ne.s32.totalorder %s38, %s39
      %p53 = scmp.eq.s32.totalorder %s17, 3
      %p54 = por %p52, %p53
      %p56 = scmp.ne.s32.totalorder %s39, %s55
      %p57 = scmp.eq.s32.totalorder %s17, 0
      %p58 = por %p56, %p57
      %s60 = sadd.s32 %s59, 1
      %p63 = scmp.eq.s32.totalorder %s11, 3
      %p64 = scmp.ne.s32.totalorder %s59, %s61
      %p65 = scmp.eq.s32.totalorder %s11, 0
      %p66 = por %p64, %p65
      %p67 = scmp.ne.s32.totalorder %s59, %s61
      %p68 = scmp.eq.s32.totalorder %s16, 3
      %p69 = por %p67, %p68
      %p70 = scmp.ne.s32.totalorder %s61, %s62
      %p71 = scmp.eq.s32.totalorder %s16, 0
      %p72 = por %p70, %p71
      %p73 = scmp.ne.s32.totalorder %s61, %s62
      %p74 = scmp.eq.s32.totalorder %s17, 3
      %p75 = por %p73, %p74
      %p77 = scmp.ne.s32.totalorder %s62, %s76
      %p78 = scmp.eq.s32.totalorder %s17, 0
      %p79 = por %p77, %p78
      %s81 = sadd.s32 %s80, 1
      %p84 = scmp.eq.s32.totalorder %s11, 3
      %p85 = scmp.ne.s32.totalorder %s80, %s82
      %p86 = scmp.eq.s32.totalorder %s11, 0
      %p87 = por %p85, %p86
      %p88 = scmp.ne.s32.totalorder %s80, %s82
      %p89 = scmp.eq.s32.totalorder %s16, 3
      %p90 = por %p88, %p89
      %p91 = scmp.ne.s32.totalorder %s82, %s83
      %p92 = scmp.eq.s32.totalorder %s16, 0
      %p93 = por %p91, %p92
      %p94 = scmp.ne.s32.totalorder %s82, %s83
      %p95 = scmp.eq.s32.totalorder %s17, 3
      %p96 = por %p94, %p95
      %p98 = scmp.ne.s32.totalorder %s83, %s97
      %p99 = scmp.eq.s32.totalorder %s17, 0
      %p100 = por %p98, %p99
      %s102 = sadd.s32 %s101, 1
      %p105 = scmp.eq.s32.totalorder %s11, 3
      %p106 = scmp.ne.s32.totalorder %s101, %s103
      %p107 = scmp.eq.s32.totalorder %s11, 0
      %p108 = por %p106, %p107
      %p109 = scmp.ne.s32.totalorder %s101, %s103
      %p110 = scmp.eq.s32.totalorder %s16, 3
      %p111 = por %p109, %p110
      %p112 = scmp.ne.s32.totalorder %s103, %s104
      %p113 = scmp.eq.s32.totalorder %s16, 0
      %p114 = por %p112, %p113
      %p115 = scmp.ne.s32.totalorder %s103, %s104
      %p116 = scmp.eq.s32.totalorder %s17, 3
      %p117 = por %p115, %p116
      %p119 = scmp.ne.s32.totalorder %s104, %s118
      %p120 = scmp.eq.s32.totalorder %s17, 0
      %p121 = por %p119, %p120
      %s123 = sadd.s32 %s122, 1
      %p126 = scmp.eq.s32.totalorder %s11, 3
      %p127 = scmp.ne.s32.totalorder %s122, %s124
      %p128 = scmp.eq.s32.totalorder %s11, 0
      %p129 = por %p127, %p128
      %p130 = scmp.ne.s32.totalorder %s122, %s124
      %p131 = scmp.eq.s32.totalorder %s16, 3
      %p132 = por %p130, %p131
      %p133 = scmp.ne.s32.totalorder %s124, %s125
      %p134 = scmp.eq.s32.totalorder %s16, 0
      %p135 = por %p133, %p134
      %p136 = scmp.ne.s32.totalorder %s124, %s125
      %p137 = scmp.eq.s32.totalorder %s17, 3
      %p138 = por %p136, %p137
      %p140 = scmp.ne.s32.totalorder %s125, %s139
      %p141 = scmp.eq.s32.totalorder %s17, 0
      %p142 = por %p140, %p141
      %s143 = ssub.s32 %s18, %s30
      %s144 = ssub.s32 %s19, %s26
      %s145 = sor.u32 %s143, %s144
      %p146 = scmp.eq.s32.totalorder %s145, 0
      %s148 = sadd.s32 %s147, 1
      %s149 = scalar_select %p146, %s147, %s148
      %p152 = pneg %p146
      %p153 = scmp.eq.s32.totalorder %s11, 3
      %p154 = por %p152, %p153
      %p155 = scmp.ne.s32.totalorder %s147, %s150
      %p156 = scmp.eq.s32.totalorder %s11, 0
      %p157 = por %p155, %p156
      %p158 = scmp.ne.s32.totalorder %s147, %s150
      %p159 = scmp.eq.s32.totalorder %s16, 3
      %p160 = por %p158, %p159
      %p161 = scmp.ne.s32.totalorder %s150, %s151
      %p162 = scmp.eq.s32.totalorder %s16, 0
      %p163 = por %p161, %p162
      %p164 = scmp.ne.s32.totalorder %s150, %s151
      %p165 = scmp.eq.s32.totalorder %s17, 3
      %p166 = por %p164, %p165
      %p168 = scmp.ne.s32.totalorder %s151, %s167
      %p169 = scmp.eq.s32.totalorder %s17, 0
      %p170 = por %p168, %p169
      %p171 = scmp.le.s32.totalorder 1, %s11
      %p172 = scmp.lt.s32.totalorder %s11, 5
      %p173 = pnand %p171, %p172
      %p174 = pneg %p173
      // Predicated region
      $region9: #{eegsym_resblock_forward.1} parent=5 // pred_check
        _
      $region10: #{eegsym_resblock_forward.1} parent=5 // pred_check_branch
        %176 = sbr.rel (%p173) target = $region12
      $region11: #{eegsym_resblock_forward.1} parent=5 // pred_region
        %s177 = ssub.s32 %s11, 1
        // Predicated region
        $region13: #{eegsym_resblock_forward.1} parent=11 // pred_check
          %p178 = pneg %p72
        $region14: #{eegsym_resblock_forward.1} parent=11 // pred_check_branch
          %180 = sbr.rel (%p178) target = $region16
        $region15: #{eegsym_resblock_forward.1} parent=11 // pred_region
          _
        $region16: #{eegsym_resblock_forward.1} parent=11 // pred_fallthru
          _
        // Predicated region
        $region17: #{eegsym_resblock_forward.1} parent=11 // pred_check
          %p181 = pneg %p93
        $region18: #{eegsym_resblock_forward.1} parent=11 // pred_check_branch
          %183 = sbr.rel (%p181) target = $region20
        $region19: #{eegsym_resblock_forward.1} parent=11 // pred_region
          _
        $region20: #{eegsym_resblock_forward.1} parent=11 // pred_fallthru
          _
        // Predicated region
        $region21: #{eegsym_resblock_forward.1} parent=11 // pred_check
          %p184 = pneg %p114
        $region22: #{eegsym_resblock_forward.1} parent=11 // pred_check_branch
          %186 = sbr.rel (%p184) target = $region24
        $region23: #{eegsym_resblock_forward.1} parent=11 // pred_region
          _
        $region24: #{eegsym_resblock_forward.1} parent=11 // pred_fallthru
          _
        // Predicated region
        $region25: #{eegsym_resblock_forward.1} parent=11 // pred_check
          %p187 = pneg %p135
        $region26: #{eegsym_resblock_forward.1} parent=11 // pred_check_branch
          %189 = sbr.rel (%p187) target = $region28
        $region27: #{eegsym_resblock_forward.1} parent=11 // pred_region
          _
        $region28: #{eegsym_resblock_forward.1} parent=11 // pred_fallthru
          _
      $region12: #{eegsym_resblock_forward.1} parent=5 // pred_fallthru
        _
      %p190 = scmp.lt.s32.totalorder %s11, 4
      // Predicated region
      $region29: #{eegsym_resblock_forward.1} parent=5 // pred_check
        %p191 = pneg %p190
      $region30: #{eegsym_resblock_forward.1} parent=5 // pred_check_branch
        %193 = sbr.rel (%p191) target = $region32
      $region31: #{eegsym_resblock_forward.1} parent=5 // pred_region
        // Predicated region
        $region33: #{eegsym_resblock_forward.1} parent=31 // pred_check
          %p194 = pneg %p45
        $region34: #{eegsym_resblock_forward.1} parent=31 // pred_check_branch
          %196 = sbr.rel (%p194) target = $region36
        $region35: #{eegsym_resblock_forward.1} parent=31 // pred_region
          %s197 = sand.u32 %s35, 1
          %s198 = sand.u32 %s35, 1
          %s199 = smul.addr %s198, 32
          %s200 = scalar_lea.vmem [#allocation2], %s199
          %s201 = smul.addr %s18, 8
          %s202 = sadd.s32 %s19, %s201
          %s203 = smul.addr %s202, 8
          %s204 = scalar_lea.vmem %s0, %s203
          // Predicated region
          $region37: #{eegsym_resblock_forward.1} parent=35 // pred_check
            _
          $region38: #{eegsym_resblock_forward.1} parent=35 // pred_check_branch
            %206 = sbr.rel (0) target = $region40
          $region39: #{eegsym_resblock_forward.1} parent=35 // pred_region
            // Predicated region
            $region41: #{eegsym_resblock_forward.1} parent=39 // pred_check
              _
            $region42: #{eegsym_resblock_forward.1} parent=39 // pred_check_branch
              %208 = sbr.rel (0) target = $region44
            $region43: #{eegsym_resblock_forward.1} parent=39 // pred_region
              // Predicated region
              $region56: #{eegsym_resblock_forward.1} parent=43 // pred_check
                _
              $region57: #{eegsym_resblock_forward.1} parent=43 // pred_check_branch
                %230 = sbr.rel (0) target = $region59
              $region58: #{eegsym_resblock_forward.1} parent=43 // pred_region
                loop: start=0, step=1, limit=1
                $region60: #{eegsym_resblock_forward.1} parent=58 // loop_pre_header
                  _
                $region61: #{eegsym_resblock_forward.1} parent=58 // loop_header
                  %s232 = sphi 0, %s236
                  %p233 = scmp.ge.s32.totalorder %s232, 1
                  %s237 = sphi %s204, %s204
                  %s238 = sphi %s200, %s200
                $region62: #{eegsym_resblock_forward.1} parent=58 // loop_header_branch
                  %235 = sbr.rel (%p233) target = $region66
                $region63: #{eegsym_resblock_forward.1} parent=58 // loop_body
                  %v239 = vld [vmem:[%s237] sm:$0xff]
                  %240 = vst [vmem:[%s238] sm:$0xff] %v239
                  %v241 = vld [vmem:[%s237 + $0x10] sm:$0xff]
                  %242 = vst [vmem:[%s238 + $0x8] sm:$0xff] %v241
                  %v243 = vld [vmem:[%s237 + $0x20] sm:$0xff]
                  %244 = vst [vmem:[%s238 + $0x10] sm:$0xff] %v243
                  %v245 = vld [vmem:[%s237 + $0x30] sm:$0xff]
                  %246 = vst [vmem:[%s238 + $0x18] sm:$0xff] %v245
                $region64: #{eegsym_resblock_forward.1} parent=58 // loop_footer
                  %s236 = sadd.s32 1, %s232
                $region65: #{eegsym_resblock_forward.1} parent=58 // loop_footer_branch
                  %231 = sbr.rel target = $region61
                $region66: #{eegsym_resblock_forward.1} parent=58 // loop_exit
                  _
              $region59: #{eegsym_resblock_forward.1} parent=43 // pred_fallthru
                _
              // Predicated region
              $region67: #{eegsym_resblock_forward.1} parent=43 // pred_check
                _
              $region68: #{eegsym_resblock_forward.1} parent=43 // pred_check_branch
                %248 = sbr.rel target = $region70
              $region69: #{eegsym_resblock_forward.1} parent=43 // pred_region
                _
              $region70: #{eegsym_resblock_forward.1} parent=43 // pred_fallthru
                _
            $region44: #{eegsym_resblock_forward.1} parent=39 // pred_fallthru
              _
            // Predicated region
            $region45: #{eegsym_resblock_forward.1} parent=39 // pred_check
              _
            $region46: #{eegsym_resblock_forward.1} parent=39 // pred_check_branch
              %210 = sbr.rel target = $region48
            $region47: #{eegsym_resblock_forward.1} parent=39 // pred_region
              %s212 = ssub.s32 256, 1
              loop: start=0, step=1, limit=1
              $region49: #{eegsym_resblock_forward.1} parent=47 // loop_pre_header
                _
              $region50: #{eegsym_resblock_forward.1} parent=47 // loop_header
                %s214 = sphi 0, %s218
                %p215 = scmp.ge.s32.totalorder %s214, 1
                %s219 = sphi %s204, %s204
                %s220 = sphi %s200, %s200
              $region51: #{eegsym_resblock_forward.1} parent=47 // loop_header_branch
                %217 = sbr.rel (%p215) target = $region55
              $region52: #{eegsym_resblock_forward.1} parent=47 // loop_body
                %v221 = vld [vmem:[%s219] sm:%s212]
                %222 = vst [vmem:[%s220] sm:%s212] %v221
                %v223 = vld [vmem:[%s219 + $0x10] sm:%s212]
                %224 = vst [vmem:[%s220 + $0x8] sm:%s212] %v223
                %v225 = vld [vmem:[%s219 + $0x20] sm:%s212]
                %226 = vst [vmem:[%s220 + $0x10] sm:%s212] %v225
                %v227 = vld [vmem:[%s219 + $0x30] sm:%s212]
                %228 = vst [vmem:[%s220 + $0x18] sm:%s212] %v227
              $region53: #{eegsym_resblock_forward.1} parent=47 // loop_footer
                %s218 = sadd.s32 1, %s214
              $region54: #{eegsym_resblock_forward.1} parent=47 // loop_footer_branch
                %213 = sbr.rel target = $region50
              $region55: #{eegsym_resblock_forward.1} parent=47 // loop_exit
                _
            $region48: #{eegsym_resblock_forward.1} parent=39 // pred_fallthru
              _
          $region40: #{eegsym_resblock_forward.1} parent=35 // pred_fallthru
            _
          %249 = vnop
        $region36: #{eegsym_resblock_forward.1} parent=31 // pred_fallthru
          _
      $region32: #{eegsym_resblock_forward.1} parent=5 // pred_fallthru
        _
      %p250 = scmp.le.s32.totalorder 1, %s11
      %p251 = scmp.lt.s32.totalorder %s11, 5
      %p252 = pnand %p250, %p251
      %p253 = pneg %p252
      // Predicated region
      $region71: #{eegsym_resblock_forward.1} parent=5 // pred_check
        _
      $region72: #{eegsym_resblock_forward.1} parent=5 // pred_check_branch
        %255 = sbr.rel (%p252) target = $region74
      $region73: #{eegsym_resblock_forward.1} parent=5 // pred_region
        %s256 = ssub.s32 %s11, 1
        %s257 = sand.u32 %s38, 1
        %s258 = sand.u32 %s38, 1
        %s259 = smul.addr %s258, 32
        %s260 = scalar_lea.vmem [#allocation2], %s259
        // Predicated region
        $region75: #{eegsym_resblock_forward.1} parent=73 // pred_check
          %p261 = pneg %p51
        $region76: #{eegsym_resblock_forward.1} parent=73 // pred_check_branch
          %263 = sbr.rel (%p261) target = $region78
        $region77: #{eegsym_resblock_forward.1} parent=73 // pred_region
          _
        $region78: #{eegsym_resblock_forward.1} parent=73 // pred_fallthru
          _
        %s264 = sand.u32 %s38, 1
        %s265 = sand.u32 %s38, 1
        %s266 = smul.addr %s265, 32
        %s267 = scalar_lea.vmem [#allocation2], %s266
        %p268 = pneg %p51
        %p269 = pneg %p48
        %p270 = pneg %p72
        %p271 = pneg %p69
        %p272 = pneg %p93
        %p273 = pneg %p90
        %p274 = pneg %p114
        %p275 = pneg %p111
        %p276 = pneg %p135
        %p277 = pneg %p132
        %p278 = pneg %p163
        %p279 = pneg %p160
        %p280 = scmp.lt.s32.totalorder %s20, 1
        %s281 = scalar_select %p280, %s20, 1
        %p282 = scmp.lt.s32.totalorder %s21, 1
        %s283 = scalar_select %p282, %s21, 1
        %s284 = smul.addr %s281, 2
        %s285 = sadd.s32 %s283, %s284
        %s286 = smul.addr %s285, 8
        %s287 = scalar_lea.vmem %s5, %s286
        %p288 = scmp.lt.s32.totalorder %s20, 1
        %s289 = scalar_select %p288, %s20, 1
        %p290 = scmp.lt.s32.totalorder %s21, 1
        %s291 = scalar_select %p290, %s21, 1
        %s292 = smul.addr %s289, 2
        %s293 = sadd.s32 %s291, %s292
        %s294 = smul.addr %s293, 8
        %s295 = scalar_lea.vmem %s5, %s294
        %v296 = vld [vmem:[%s260] sm:$0x1f]
        %v297 = vld [vmem:[%s1] sm:$0xff]
        %v298 = vld [vmem:[%s1 + $0x8] sm:$0xff]
        %v299 = vld [vmem:[%s1 + $0x10] sm:$0xff]
        %v300 = vld [vmem:[%s1 + $0x18] sm:$0xff]
        %s301 = scalar_lea.vmem %s260, 8 [#allocation2]
        %v302 = vld [vmem:[%s301] sm:$0x1f]
        %s303 = scalar_lea.vmem %s1, 32
        %v304 = vld [vmem:[%s303] sm:$0xff]
        %v305 = vld [vmem:[%s303 + $0x8] sm:$0xff]
        %v306 = vld [vmem:[%s303 + $0x10] sm:$0xff]
        %v307 = vld [vmem:[%s303 + $0x18] sm:$0xff]
        %vm308 = vcmask 130048
        %v310 = vsel %vm308, %v302, 0
        %312 = vmatpush.msra.mxu0 0.0
        %313 = vmatpush.msra.mxu0 0.0
        %314 = vmatpush.msra.mxu0 0.0
        %315 = vmatpush.msra.mxu0 0.0
        %316 = vmatpush.msra.mxu0 0.0
        %317 = vmatpush.msra.mxu0 0.0
        %318 = vmatpush.msra.mxu0 0.0
        %319 = vmatpush.msra.mxu0 0.0
        %320 = vmatpush.msra.mxu0 0.0
        %321 = vmatpush.msra.mxu0 0.0
        %322 = vmatpush.msra.mxu0 0.0
        %323 = vmatpush.msra.mxu0 0.0
        %324 = vmatpush.msra.mxu0 0.0
        %325 = vmatpush.msra.mxu0 0.0
        %326 = vmatpush.msra.mxu0 %v306
        %327 = vmatpush.msra.mxu0 %v304
        %328 = vmatmul.f32.gmra.mxu0 %v310
        %v329 = vpop.f32.mrf.mxu0
        %v330 = vadd.f32 0.0, %v329
        %331 = vdwg.mxu0
        %332 = vmatpush.msra.mxu0 0.0
        %333 = vmatpush.msra.mxu0 0.0
        %334 = vmatpush.msra.mxu0 0.0
        %335 = vmatpush.msra.mxu0 0.0
        %336 = vmatpush.msra.mxu0 0.0
        %337 = vmatpush.msra.mxu0 0.0
        %338 = vmatpush.msra.mxu0 0.0
        %339 = vmatpush.msra.mxu0 0.0
        %340 = vmatpush.msra.mxu0 0.0
        %341 = vmatpush.msra.mxu0 0.0
        %342 = vmatpush.msra.mxu0 0.0
        %343 = vmatpush.msra.mxu0 0.0
        %344 = vmatpush.msra.mxu0 0.0
        %345 = vmatpush.msra.mxu0 0.0
        %346 = vmatpush.msra.mxu0 %v307
        %347 = vmatpush.msra.mxu0 %v305
        %348 = vmatmul.f32.gmra.mxu0 %v310
        %v349 = vpop.f32.mrf.mxu0
        %v350 = vadd.f32 0.0, %v349
        %351 = vdwg.mxu0
        %v353 = vsel %vm308, %v296, 0
        %355 = vmatpush.msra.mxu0 0.0
        %356 = vmatpush.msra.mxu0 0.0
        %357 = vmatpush.msra.mxu0 0.0
        %358 = vmatpush.msra.mxu0 0.0
        %359 = vmatpush.msra.mxu0 0.0
        %360 = vmatpush.msra.mxu0 0.0
        %361 = vmatpush.msra.mxu0 0.0
        %362 = vmatpush.msra.mxu0 0.0
        %363 = vmatpush.msra.mxu0 0.0
        %364 = vmatpush.msra.mxu0 0.0
        %365 = vmatpush.msra.mxu0 0.0
        %366 = vmatpush.msra.mxu0 0.0
        %367 = vmatpush.msra.mxu0 0.0
        %368 = vmatpush.msra.mxu0 0.0
        %369 = vmatpush.msra.mxu0 %v299
        %370 = vmatpush.msra.mxu0 %v297
        %371 = vmatmul.f32.gmra.mxu0 %v353
        %v372 = vpop.f32.mrf.mxu0
        %v373 = vadd.f32 %v330, %v372
        %374 = vdwg.mxu0
        %375 = vmatpush.msra.mxu0 0.0
        %376 = vmatpush.msra.mxu0 0.0
        %377 = vmatpush.msra.mxu0 0.0
        %378 = vmatpush.msra.mxu0 0.0
        %379 = vmatpush.msra.mxu0 0.0
        %380 = vmatpush.msra.mxu0 0.0
        %381 = vmatpush.msra.mxu0 0.0
        %382 = vmatpush.msra.mxu0 0.0
        %383 = vmatpush.msra.mxu0 0.0
        %384 = vmatpush.msra.mxu0 0.0
        %385 = vmatpush.msra.mxu0 0.0
        %386 = vmatpush.msra.mxu0 0.0
        %387 = vmatpush.msra.mxu0 0.0
        %388 = vmatpush.msra.mxu0 0.0
        %389 = vmatpush.msra.mxu0 %v300
        %390 = vmatpush.msra.mxu0 %v298
        %391 = vmatmul.f32.gmra.mxu0 %v353
        %v392 = vpop.f32.mrf.mxu0
        %v393 = vadd.f32 %v350, %v392
        %394 = vdwg.mxu0
        %s395 = scalar_lea.vmem %s260, 16 [#allocation2]
        %v396 = vld [vmem:[%s395] sm:$0x1f]
        %s397 = scalar_lea.vmem %s1, 64
        %v398 = vld [vmem:[%s397] sm:$0xff]
        %v399 = vld [vmem:[%s397 + $0x8] sm:$0xff]
        %v400 = vld [vmem:[%s397 + $0x10] sm:$0xff]
        %v401 = vld [vmem:[%s397 + $0x18] sm:$0xff]
        %v403 = vsel %vm308, %v396, 0
        %405 = vmatpush.msra.mxu0 0.0
        %406 = vmatpush.msra.mxu0 0.0
        %407 = vmatpush.msra.mxu0 0.0
        %408 = vmatpush.msra.mxu0 0.0
        %409 = vmatpush.msra.mxu0 0.0
        %410 = vmatpush.msra.mxu0 0.0
        %411 = vmatpush.msra.mxu0 0.0
        %412 = vmatpush.msra.mxu0 0.0
        %413 = vmatpush.msra.mxu0 0.0
        %414 = vmatpush.msra.mxu0 0.0
        %415 = vmatpush.msra.mxu0 0.0
        %416 = vmatpush.msra.mxu0 0.0
        %417 = vmatpush.msra.mxu0 0.0
        %418 = vmatpush.msra.mxu0 0.0
        %419 = vmatpush.msra.mxu0 %v400
        %420 = vmatpush.msra.mxu0 %v398
        %421 = vmatmul.f32.gmra.mxu0 %v403
        %v422 = vpop.f32.mrf.mxu0
        %v423 = vadd.f32 0.0, %v422
        %424 = vdwg.mxu0
        %425 = vmatpush.msra.mxu0 0.0
        %426 = vmatpush.msra.mxu0 0.0
        %427 = vmatpush.msra.mxu0 0.0
        %428 = vmatpush.msra.mxu0 0.0
        %429 = vmatpush.msra.mxu0 0.0
        %430 = vmatpush.msra.mxu0 0.0
        %431 = vmatpush.msra.mxu0 0.0
        %432 = vmatpush.msra.mxu0 0.0
        %433 = vmatpush.msra.mxu0 0.0
        %434 = vmatpush.msra.mxu0 0.0
        %435 = vmatpush.msra.mxu0 0.0
        %436 = vmatpush.msra.mxu0 0.0
        %437 = vmatpush.msra.mxu0 0.0
        %438 = vmatpush.msra.mxu0 0.0
        %439 = vmatpush.msra.mxu0 %v401
        %440 = vmatpush.msra.mxu0 %v399
        %441 = vmatmul.f32.gmra.mxu0 %v403
        %v442 = vpop.f32.mrf.mxu0
        %v443 = vadd.f32 0.0, %v442
        %444 = vdwg.mxu0
        %v445 = vadd.f32 %v373, %v423
        %v446 = vadd.f32 %v393, %v443
        %s447 = scalar_lea.vmem %s260, 24 [#allocation2]
        %v448 = vld [vmem:[%s447] sm:$0x1f]
        %s449 = scalar_lea.vmem %s1, 96
        %v450 = vld [vmem:[%s449] sm:$0xff]
        %v451 = vld [vmem:[%s449 + $0x8] sm:$0xff]
        %v452 = vld [vmem:[%s449 + $0x10] sm:$0xff]
        %v453 = vld [vmem:[%s449 + $0x18] sm:$0xff]
        %v455 = vsel %vm308, %v448, 0
        %457 = vmatpush.msra.mxu0 0.0
        %458 = vmatpush.msra.mxu0 0.0
        %459 = vmatpush.msra.mxu0 0.0
        %460 = vmatpush.msra.mxu0 0.0
        %461 = vmatpush.msra.mxu0 0.0
        %462 = vmatpush.msra.mxu0 0.0
        %463 = vmatpush.msra.mxu0 0.0
        %464 = vmatpush.msra.mxu0 0.0
        %465 = vmatpush.msra.mxu0 0.0
        %466 = vmatpush.msra.mxu0 0.0
        %467 = vmatpush.msra.mxu0 0.0
        %468 = vmatpush.msra.mxu0 0.0
        %469 = vmatpush.msra.mxu0 0.0
        %470 = vmatpush.msra.mxu0 0.0
        %471 = vmatpush.msra.mxu0 %v452
        %472 = vmatpush.msra.mxu0 %v450
        %473 = vmatmul.f32.gmra.mxu0 %v455
        %v474 = vpop.f32.mrf.mxu0
        %v475 = vadd.f32 0.0, %v474
        %476 = vdwg.mxu0
        %477 = vmatpush.msra.mxu0 0.0
        %478 = vmatpush.msra.mxu0 0.0
        %479 = vmatpush.msra.mxu0 0.0
        %480 = vmatpush.msra.mxu0 0.0
        %481 = vmatpush.msra.mxu0 0.0
        %482 = vmatpush.msra.mxu0 0.0
        %483 = vmatpush.msra.mxu0 0.0
        %484 = vmatpush.msra.mxu0 0.0
        %485 = vmatpush.msra.mxu0 0.0
        %486 = vmatpush.msra.mxu0 0.0
        %487 = vmatpush.msra.mxu0 0.0
        %488 = vmatpush.msra.mxu0 0.0
        %489 = vmatpush.msra.mxu0 0.0
        %490 = vmatpush.msra.mxu0 0.0
        %491 = vmatpush.msra.mxu0 %v453
        %492 = vmatpush.msra.mxu0 %v451
        %493 = vmatmul.f32.gmra.mxu0 %v455
        %v494 = vpop.f32.mrf.mxu0
        %v495 = vadd.f32 0.0, %v494
        %496 = vdwg.mxu0
        %v497 = vadd.f32 %v445, %v475
        %v498 = vadd.f32 %v446, %v495
        %v499 = vld [vmem:[%s2] sm:$0x3]
        %v501 = vperm.slane %v499, 0
        %v502 = vperm.slane %v499, 1
        %v505 = vadd.f32 %v497, %v501
        %v506 = vadd.f32 %v498, %v502
        %vm507 = vcmp.gt.f32.partialorder %v505, 0.0
        %vm508 = vcmp.gt.f32.partialorder %v506, 0.0
        %v509 = vmin.f32 %v505, 0.0
        %v510 = vmin.f32 %v506, 0.0
        %v511 = vmul.f32 %v509, 1.442695
        %v512 = vpow.pop %v511
        %v513 = vmul.f32 %v510, 1.442695
        %v514 = vpow.pop %v513
        %v515 = vsub.f32 %v512, 1.0
        %v516 = vsub.f32 %v514, 1.0
        %v517 = vsel %vm507, %v505, %v515
        %v518 = vsel %vm508, %v506, %v516
        %v519 = vadd.f32 %v517, %v518
        %521 = vrot.lane.b32.xlu0 %v519, 112
        %v522 = vpop.permute.xlu0 %521
        %524 = vrot.lane.b32.xlu0 %v519, 96
        %v525 = vpop.permute.xlu0 %524
        %527 = vrot.lane.b32.xlu0 %v519, 80
        %v528 = vpop.permute.xlu0 %527
        %530 = vrot.lane.b32.xlu0 %v519, 64
        %v531 = vpop.permute.xlu0 %530
        %533 = vrot.lane.b32.xlu0 %v519, 48
        %v534 = vpop.permute.xlu0 %533
        %536 = vrot.lane.b32.xlu0 %v519, 32
        %v537 = vpop.permute.xlu0 %536
        %539 = vrot.lane.b32.xlu0 %v519, 16
        %v540 = vpop.permute.xlu0 %539
        %v542 = vrot.slane %v525, 4
        %vm543 = vcmask 1047556
        %v544 = vsel %vm543, %v542, %v519
        %v545 = vrot.slane %v519, 4
        %v546 = vsel %vm543, %v525, %v545
        %v548 = vunpack.c.l.s4 1983009808
        %v549 = vunpack.c.0.s8 %v548
        %v550 = vperm.slane %v544, %v549
        %v552 = vunpack.c.l.s4 1983009808
        %v553 = vunpack.c.0.s8 %v552
        %v554 = vperm.slane %v546, %v553
        %v555 = vrot.slane %v528, 4
        %v556 = vsel %vm543, %v555, %v522
        %v557 = vrot.slane %v522, 4
        %v558 = vsel %vm543, %v528, %v557
        %v560 = vunpack.c.l.s4 1983009808
        %v561 = vunpack.c.0.s8 %v560
        %v562 = vperm.slane %v556, %v561
        %v564 = vunpack.c.l.s4 1983009808
        %v565 = vunpack.c.0.s8 %v564
        %v566 = vperm.slane %v558, %v565
        %v567 = vrot.slane %v537, 4
        %v568 = vsel %vm543, %v567, %v531
        %v569 = vrot.slane %v531, 4
        %v570 = vsel %vm543, %v537, %v569
        %v572 = vunpack.c.l.s4 1983009808
        %v573 = vunpack.c.0.s8 %v572
        %v574 = vperm.slane %v568, %v573
        %v576 = vunpack.c.l.s4 1983009808
        %v577 = vunpack.c.0.s8 %v576
        %v578 = vperm.slane %v570, %v577
        %v579 = vrot.slane %v540, 4
        %v580 = vsel %vm543, %v579, %v534
        %v581 = vrot.slane %v534, 4
        %v582 = vsel %vm543, %v540, %v581
        %v584 = vunpack.c.l.s4 1983009808
        %v585 = vunpack.c.0.s8 %v584
        %v586 = vperm.slane %v580, %v585
        %v588 = vunpack.c.l.s4 1983009808
        %v589 = vunpack.c.0.s8 %v588
        %v590 = vperm.slane %v582, %v589
        %v591 = vrot.slane %v562, 4
        %v592 = vsel %vm543, %v591, %v550
        %v593 = vrot.slane %v550, 4
        %v594 = vsel %vm543, %v562, %v593
        %v596 = vunpack.c.l.s4 1934713408
        %v597 = vunpack.c.0.s8 %v596
        %v598 = vperm.slane %v592, %v597
        %v600 = vunpack.c.l.s4 1934713408
        %v601 = vunpack.c.0.s8 %v600
        %v602 = vperm.slane %v594, %v601
        %v603 = vrot.slane %v566, 4
        %v604 = vsel %vm543, %v603, %v554
        %v606 = vunpack.c.l.s4 1934713408
        %v607 = vunpack.c.0.s8 %v606
        %v608 = vperm.slane %v604, %v607
        %v609 = vrot.slane %v586, 4
        %v610 = vsel %vm543, %v609, %v574
        %v611 = vrot.slane %v574, 4
        %v612 = vsel %vm543, %v586, %v611
        %v614 = vunpack.c.l.s4 1934713408
        %v615 = vunpack.c.0.s8 %v614
        %v616 = vperm.slane %v610, %v615
        %v618 = vunpack.c.l.s4 1934713408
        %v619 = vunpack.c.0.s8 %v618
        %v620 = vperm.slane %v612, %v619
        %v621 = vrot.slane %v590, 4
        %v622 = vsel %vm543, %v621, %v578
        %v624 = vunpack.c.l.s4 1934713408
        %v625 = vunpack.c.0.s8 %v624
        %v626 = vperm.slane %v622, %v625
        %v627 = vrot.slane %v616, 4
        %v628 = vsel %vm543, %v627, %v598
        %v629 = vrot.slane %v598, 4
        %v630 = vsel %vm543, %v616, %v629
        %v631 = vrot.slane %v620, 4
        %v632 = vsel %vm543, %v631, %v602
        %v633 = vrot.slane %v602, 4
        %v634 = vsel %vm543, %v620, %v633
        %v635 = vrot.slane %v626, 4
        %v636 = vsel %vm543, %v635, %v608
        %642 = vrot.lane.b32.xlu0 %v628, 120
        %v643 = vpop.permute.xlu0 %642
        %644 = vrot.lane.b32.xlu0 %v630, 120
        %v645 = vpop.permute.xlu0 %644
        %646 = vrot.lane.b32.xlu0 %v632, 120
        %v647 = vpop.permute.xlu0 %646
        %648 = vrot.lane.b32.xlu0 %v634, 120
        %v649 = vpop.permute.xlu0 %648
        %650 = vrot.lane.b32.xlu0 %v636, 120
        %v651 = vpop.permute.xlu0 %650
        %v657 = vadd.f32 %v628, %v643
        %v658 = vadd.f32 %v630, %v645
        %v659 = vadd.f32 %v632, %v647
        %v660 = vadd.f32 %v634, %v649
        %v661 = vadd.f32 %v636, %v651
        %v662 = vmul.f32 %v657, 0.5
        %v663 = vmul.f32 %v658, 0.5
        %v664 = vmul.f32 %v659, 0.5
        %v665 = vmul.f32 %v660, 0.5
        %v666 = vmul.f32 %v661, 0.5
        %v667 = vrot.slane %v664, 4
        %v668 = vsel %vm543, %v667, %v662
        %v669 = vrot.slane %v662, 4
        %v670 = vsel %vm543, %v664, %v669
        %v672 = vunpack.c.l.s4 1983009808
        %v673 = vunpack.c.0.s8 %v672
        %v674 = vperm.slane %v668, %v673
        %v676 = vunpack.c.l.s4 1983009808
        %v677 = vunpack.c.0.s8 %v676
        %v678 = vperm.slane %v670, %v677
        %v679 = vrot.slane %v665, 4
        %v680 = vsel %vm543, %v679, %v663
        %v681 = vrot.slane %v663, 4
        %v682 = vsel %vm543, %v665, %v681
        %v684 = vunpack.c.l.s4 1983009808
        %v685 = vunpack.c.0.s8 %v684
        %v686 = vperm.slane %v680, %v685
        %v688 = vunpack.c.l.s4 1983009808
        %v689 = vunpack.c.0.s8 %v688
        %v690 = vperm.slane %v682, %v689
        %v691 = vrot.slane %v666, 4
        %v692 = vsel %vm543, 0.0, %v691
        %v694 = vunpack.c.l.s4 1983009808
        %v695 = vunpack.c.0.s8 %v694
        %v696 = vperm.slane %v666, %v695
        %v698 = vunpack.c.l.s4 1983009808
        %v699 = vunpack.c.0.s8 %v698
        %v700 = vperm.slane %v692, %v699
        %v701 = vrot.slane %v686, 4
        %v702 = vsel %vm543, %v701, %v674
        %v703 = vrot.slane %v674, 4
        %v704 = vsel %vm543, %v686, %v703
        %v706 = vunpack.c.l.s4 1934713408
        %v707 = vunpack.c.0.s8 %v706
        %v708 = vperm.slane %v702, %v707
        %v710 = vunpack.c.l.s4 1934713408
        %v711 = vunpack.c.0.s8 %v710
        %v712 = vperm.slane %v704, %v711
        %v713 = vrot.slane %v690, 4
        %v714 = vsel %vm543, %v713, %v678
        %v715 = vrot.slane %v678, 4
        %v716 = vsel %vm543, %v690, %v715
        %v718 = vunpack.c.l.s4 1934713408
        %v719 = vunpack.c.0.s8 %v718
        %v720 = vperm.slane %v714, %v719
        %v722 = vunpack.c.l.s4 1934713408
        %v723 = vunpack.c.0.s8 %v722
        %v724 = vperm.slane %v716, %v723
        %v725 = vrot.slane %v696, 4
        %v726 = vsel %vm543, 0.0, %v725
        %v728 = vunpack.c.l.s4 1934713408
        %v729 = vunpack.c.0.s8 %v728
        %v730 = vperm.slane %v696, %v729
        %v732 = vunpack.c.l.s4 1934713408
        %v733 = vunpack.c.0.s8 %v732
        %v734 = vperm.slane %v726, %v733
        %v735 = vrot.slane %v700, 4
        %v736 = vsel %vm543, 0.0, %v735
        %v738 = vunpack.c.l.s4 1934713408
        %v739 = vunpack.c.0.s8 %v738
        %v740 = vperm.slane %v700, %v739
        %v742 = vunpack.c.l.s4 1934713408
        %v743 = vunpack.c.0.s8 %v742
        %v744 = vperm.slane %v736, %v743
        %v745 = vrot.slane %v730, 4
        %v746 = vsel %vm543, %v745, %v708
        %v747 = vrot.slane %v708, 4
        %v748 = vsel %vm543, %v730, %v747
        %v749 = vrot.slane %v734, 4
        %v750 = vsel %vm543, %v749, %v712
        %v751 = vrot.slane %v712, 4
        %v752 = vsel %vm543, %v734, %v751
        %v753 = vrot.slane %v740, 4
        %v754 = vsel %vm543, %v753, %v720
        %v755 = vrot.slane %v720, 4
        %v756 = vsel %vm543, %v740, %v755
        %v757 = vrot.slane %v744, 4
        %v758 = vsel %vm543, %v757, %v724
        %v759 = vrot.slane %v724, 4
        %v760 = vsel %vm543, %v744, %v759
        %762 = vrot.lane.b32.xlu0 %v748, 8
        %v763 = vpop.permute.xlu0 %762
        %766 = vrot.lane.b32.xlu0 %v750, 16
        %v767 = vpop.permute.xlu0 %766
        %770 = vrot.lane.b32.xlu0 %v752, 24
        %v771 = vpop.permute.xlu0 %770
        %774 = vrot.lane.b32.xlu0 %v754, 32
        %v775 = vpop.permute.xlu0 %774
        %778 = vrot.lane.b32.xlu0 %v756, 40
        %v779 = vpop.permute.xlu0 %778
        %782 = vrot.lane.b32.xlu0 %v758, 48
        %v783 = vpop.permute.xlu0 %782
        %786 = vrot.lane.b32.xlu0 %v760, 56
        %v787 = vpop.permute.xlu0 %786
        %vm789 = vcmask 64512
        %v790 = vsel %vm789, %v746, %v763
        %v791 = vsel %vm308, %v790, %v767
        %vm792 = vcmask 195584
        %v793 = vsel %vm792, %v791, %v771
        %vm794 = vcmask 261120
        %v795 = vsel %vm794, %v793, %v775
        %vm796 = vcmask 326656
        %v797 = vsel %vm796, %v795, %v779
        %vm798 = vcmask 392192
        %v799 = vsel %vm798, %v797, %v783
        %vm800 = vcmask 457728
        %v801 = vsel %vm800, %v799, %v787
        %v803 = vrot.slane %v801, 1
        %804 = vrot.lane.b32.xlu0 %v803, 64
        %v805 = vpop.permute.xlu0 %804
        %v807 = vrot.slane %v801, 2
        %v809 = vrot.slane %v801, 3
        %810 = vrot.lane.b32.xlu0 %v809, 64
        %v811 = vpop.permute.xlu0 %810
        %v813 = vrot.slane %v801, 4
        %vm814 = vcmask 523264
        %v815 = vsel %vm814, %v801, %v805
        %v816 = vsel %vm814, %v807, %v811
        %v817 = vld [vmem:[%s3] sm:$0xff]
        %v818 = vld [vmem:[%s3 + $0x8] sm:$0xff]
        %v819 = vld [vmem:[%s3 + $0x10] sm:$0xff]
        %v820 = vld [vmem:[%s3 + $0x18] sm:$0xff]
        %v821 = vld [vmem:[%s3 + $0x20] sm:$0xff]
        %v822 = vld [vmem:[%s3 + $0x28] sm:$0xff]
        %v823 = vld [vmem:[%s3 + $0x30] sm:$0xff]
        %v824 = vld [vmem:[%s3 + $0x38] sm:$0xff]
        %v825 = vld [vmem:[%s3 + $0x40] sm:$0xff]
        %v826 = vld [vmem:[%s3 + $0x48] sm:$0xff]
        %v827 = vld [vmem:[%s3 + $0x50] sm:$0xff]
        %v828 = vld [vmem:[%s3 + $0x58] sm:$0xff]
        %v829 = vld [vmem:[%s3 + $0x60] sm:$0xff]
        %v830 = vld [vmem:[%s3 + $0x68] sm:$0xff]
        %v831 = vld [vmem:[%s3 + $0x70] sm:$0xff]
        %v832 = vld [vmem:[%s3 + $0x78] sm:$0xff]
        %v833 = vld [vmem:[%s3 + $0x80] sm:$0xff]
        %v834 = vld [vmem:[%s3 + $0x88] sm:$0xff]
        %v835 = vld [vmem:[%s3 + $0x90] sm:$0xff]
        %v836 = vld [vmem:[%s3 + $0x98] sm:$0xff]
        %v837 = vld [vmem:[%s3 + $0xa0] sm:$0xff]
        %v838 = vld [vmem:[%s3 + $0xa8] sm:$0xff]
        %v839 = vld [vmem:[%s3 + $0xb0] sm:$0xff]
        %v840 = vld [vmem:[%s3 + $0xb8] sm:$0xff]
        %v841 = vld [vmem:[%s3 + $0xc0] sm:$0xff]
        %v842 = vld [vmem:[%s3 + $0xc8] sm:$0xff]
        %v843 = vld [vmem:[%s3 + $0xd0] sm:$0xff]
        %v844 = vld [vmem:[%s3 + $0xd8] sm:$0xff]
        %v845 = vld [vmem:[%s3 + $0xe0] sm:$0xff]
        %v846 = vld [vmem:[%s3 + $0xe8] sm:$0xff]
        %v847 = vld [vmem:[%s3 + $0xf0] sm:$0xff]
        %v848 = vld [vmem:[%s3 + $0xf8] sm:$0xff]
        %v849 = vld [vmem:[%s3 + $0x100] sm:$0xff]
        %v850 = vld [vmem:[%s3 + $0x108] sm:$0xff]
        %v851 = vld [vmem:[%s3 + $0x110] sm:$0xff]
        %v852 = vld [vmem:[%s3 + $0x118] sm:$0xff]
        %v853 = vld [vmem:[%s3 + $0x120] sm:$0xff]
        %v854 = vld [vmem:[%s3 + $0x128] sm:$0xff]
        %v855 = vld [vmem:[%s3 + $0x130] sm:$0xff]
        %v856 = vld [vmem:[%s3 + $0x138] sm:$0xff]
        %v857 = vld [vmem:[%s4] sm:$0x1]
        %v858 = vsel %vm814, %v813, 0
        %860 = vmatpush.msra.mxu0 %v832
        %861 = vmatpush.msra.mxu0 %v831
        %862 = vmatpush.msra.mxu0 %v830
        %863 = vmatpush.msra.mxu0 %v829
        %864 = vmatpush.msra.mxu0 %v828
        %865 = vmatpush.msra.mxu0 %v827
        %866 = vmatpush.msra.mxu0 %v826
        %867 = vmatpush.msra.mxu0 %v825
        %868 = vmatpush.msra.mxu0 %v824
        %869 = vmatpush.msra.mxu0 %v823
        %870 = vmatpush.msra.mxu0 %v822
        %871 = vmatpush.msra.mxu0 %v821
        %872 = vmatpush.msra.mxu0 %v820
        %873 = vmatpush.msra.mxu0 %v819
        %874 = vmatpush.msra.mxu0 %v818
        %875 = vmatpush.msra.mxu0 %v817
        %876 = vmatmul.f32.gmra.mxu0 %v815
        %v877 = vpop.f32.mrf.mxu0
        %v878 = vadd.f32 %v857, %v877
        %879 = vdwg.mxu0
        %880 = vmatpush.msra.mxu0 %v848
        %881 = vmatpush.msra.mxu0 %v847
        %882 = vmatpush.msra.mxu0 %v846
        %883 = vmatpush.msra.mxu0 %v845
        %884 = vmatpush.msra.mxu0 %v844
        %885 = vmatpush.msra.mxu0 %v843
        %886 = vmatpush.msra.mxu0 %v842
        %887 = vmatpush.msra.mxu0 %v841
        %888 = vmatpush.msra.mxu0 %v840
        %889 = vmatpush.msra.mxu0 %v839
        %890 = vmatpush.msra.mxu0 %v838
        %891 = vmatpush.msra.mxu0 %v837
        %892 = vmatpush.msra.mxu0 %v836
        %893 = vmatpush.msra.mxu0 %v835
        %894 = vmatpush.msra.mxu0 %v834
        %895 = vmatpush.msra.mxu0 %v833
        %896 = vmatmul.f32.gmra.mxu0 %v816
        %v897 = vpop.f32.mrf.mxu0
        %v898 = vadd.f32 %v878, %v897
        %899 = vdwg.mxu0
        %900 = vmatpush.msra.mxu0 0.0
        %901 = vmatpush.msra.mxu0 0.0
        %902 = vmatpush.msra.mxu0 0.0
        %903 = vmatpush.msra.mxu0 0.0
        %904 = vmatpush.msra.mxu0 0.0
        %905 = vmatpush.msra.mxu0 0.0
        %906 = vmatpush.msra.mxu0 0.0
        %907 = vmatpush.msra.mxu0 0.0
        %908 = vmatpush.msra.mxu0 %v856
        %909 = vmatpush.msra.mxu0 %v855
        %910 = vmatpush.msra.mxu0 %v854
        %911 = vmatpush.msra.mxu0 %v853
        %912 = vmatpush.msra.mxu0 %v852
        %913 = vmatpush.msra.mxu0 %v851
        %914 = vmatpush.msra.mxu0 %v850
        %915 = vmatpush.msra.mxu0 %v849
        %916 = vmatmul.f32.gmra.mxu0 %v858
        %v917 = vpop.f32.mrf.mxu0
        %v918 = vadd.f32 %v898, %v917
        %919 = vdwg.mxu0
        %vm920 = vcmp.gt.f32.partialorder %v918, 0.0
        %v921 = vmin.f32 %v918, 0.0
        %v922 = vmul.f32 %v921, 1.442695
        %v923 = vpow.pop %v922
        %v924 = vsub.f32 %v923, 1.0
        %v925 = vsel %vm920, %v918, %v924
        %v926 = vperm.slane %v925, 0
        %v927 = vadd.f32 %v801, %v926
        %vm928 = vcmask 520192
        %929 = vst.msk [vmem:[%s295] sm:$0x1f] %vm928, %v927
        %p930 = scmp.lt.s32.totalorder %s20, 1
        %s931 = scalar_select %p930, %s20, 1
        %p932 = scmp.lt.s32.totalorder %s21, 1
        %s933 = scalar_select %p932, %s21, 1
        %s934 = smul.addr %s931, 2
        %s935 = sadd.s32 %s933, %s934
        %s936 = smul.addr %s935, 8
        %s937 = scalar_lea.vmem %s5, %s936
        // Predicated region
        $region79: #{eegsym_resblock_forward.1} parent=73 // pred_check
          %p938 = pneg %p160
        $region80: #{eegsym_resblock_forward.1} parent=73 // pred_check_branch
          %940 = sbr.rel (%p938) target = $region82
        $region81: #{eegsym_resblock_forward.1} parent=73 // pred_region
          _
        $region82: #{eegsym_resblock_forward.1} parent=73 // pred_fallthru
          _
      $region74: #{eegsym_resblock_forward.1} parent=5 // pred_fallthru
        _
      %p941 = scmp.le.s32.totalorder 2, %s11
      // Predicated region
      $region83: #{eegsym_resblock_forward.1} parent=5 // pred_check
        %p942 = pneg %p941
      $region84: #{eegsym_resblock_forward.1} parent=5 // pred_check_branch
        %944 = sbr.rel (%p942) target = $region86
      $region85: #{eegsym_resblock_forward.1} parent=5 // pred_region
        %s945 = ssub.s32 %s11, 2
        // Predicated region
        $region87: #{eegsym_resblock_forward.1} parent=85 // pred_check
          %p946 = pneg %p166
        $region88: #{eegsym_resblock_forward.1} parent=85 // pred_check_branch
          %948 = sbr.rel (%p946) target = $region90
        $region89: #{eegsym_resblock_forward.1} parent=85 // pred_region
          %p949 = scmp.lt.s32.totalorder %s22, 1
          %s950 = scalar_select %p949, %s22, 1
          %p951 = scmp.lt.s32.totalorder %s23, 1
          %s952 = scalar_select %p951, %s23, 1
          %s953 = smul.addr %s950, 2
          %s954 = sadd.s32 %s952, %s953
          %s955 = smul.addr %s954, 8
          %s956 = scalar_lea.vmem %s5, %s955
        $region90: #{eegsym_resblock_forward.1} parent=85 // pred_fallthru
          _
      $region86: #{eegsym_resblock_forward.1} parent=5 // pred_fallthru
        _
    $region6: #{eegsym_resblock_forward.1} parent=1 // loop_footer
      %s15 = sadd.s32 1, %s11
    $region7: #{eegsym_resblock_forward.1} parent=1 // loop_footer_branch
      %10 = sbr.rel target = $region3
    $region8: #{eegsym_resblock_forward.1} parent=1 // loop_exit
      _

</llo_original>
